<compile_context>
chip_gen: v7x
topology: tpu7x:2x2x1
jax: 0.10.0
libtpu: 0.0.40
codegen_flags: <defaults>
</compile_context>

<pallas_src>
import jax
import jax.numpy as jnp
from jax.experimental import pallas as pl
from jax.experimental.pallas import tpu as pltpu


def _round_up(x, m):
    return ((x + m - 1) // m) * m


def logreg_kernel(xt_ref, w_ref, b_ref, o_ref):
    # xt_ref: (F, TB)  features on sublanes, batch on lanes (lane-dense)
    # w_ref : (F, 1)   resident weight column (grid-invariant)
    # b_ref : (1, 1)   bias scalar in SMEM
    # o_ref : (1, TB)  lane-dense output row
    prod = xt_ref[...] * w_ref[...]               # VPU: (F,1) lane-broadcast * (F,TB)
    z = jnp.sum(prod, axis=0, keepdims=True)      # XLU: sublane reduce over F -> (1,TB)
    z = z + b_ref[0, 0]                           # scalar bias from SMEM
    # sigmoid: exp on EUP, reciprocal on EUP (vrcp) instead of a VPU divide
    o_ref[...] = pl.reciprocal(1.0 + jnp.exp(-z), approx=True).astype(o_ref.dtype)


def logistic_regression(x, w, b, *, tb=None):
    """sigmoid(x @ w + b).  x: [B, F] f32, w: [F, 1] f32, b: scalar-ish f32 -> [B, 1]."""
    B, F = x.shape
    assert w.shape == (F, 1)

    # --- batch tile (lane axis) --------------------------------------------
    if tb is None:
        tb = 1024                              # ~512-2048 rows amortizes per-step overhead
    tb = min(tb, _round_up(B, 128))            # don't over-tile tiny batches
    # keep double-buffered x tile (2 * TB * F * 4B) well under ~16 MiB so the
    # default scoped VMEM limit is safe even on v7x (64 MiB physical).
    vmem_cap_rows = (8 * 1024 * 1024) // max(1, F * 4)
    tb = min(tb, max(128, (vmem_cap_rows // 128) * 128))
    tb = max(128, _round_up(tb, 128))

    B_pad = _round_up(B, tb)
    if B_pad != B:
        x = jnp.pad(x, ((0, B_pad - B), (0, 0)))   # padded rows cropped after the kernel
    xt = x.T                                       # layout plumbing: batch -> lane axis
    b2 = jnp.asarray(b, jnp.float32).reshape(1, 1)

    num_tiles = B_pad // tb
    out = pl.pallas_call(
        logreg_kernel,
        out_shape=jax.ShapeDtypeStruct((1, B_pad), jnp.float32),
        grid_spec=pltpu.PrefetchScalarGridSpec(
            num_scalar_prefetch=0,
            grid=(num_tiles,),
            in_specs=[
                pl.BlockSpec((F, tb), lambda i: (0, i)),                 # x tile (pipelined)
                pl.BlockSpec((F, 1), lambda i: (0, 0)),                  # weights: resident
                pl.BlockSpec(memory_space=pltpu.MemorySpace.SMEM),       # bias scalar in SMEM
            ],
            out_specs=pl.BlockSpec((1, tb), lambda i: (0, i)),           # lane-dense output row
        ),
        compiler_params=pltpu.CompilerParams(
            dimension_semantics=("parallel",),   # independent batch tiles (megacore on v7x)
        ),
    )(xt, w, b2)

    return out[0, :B].reshape(B, 1)


if __name__ == "__main__":
    # config.n_factor = 32, batch = 8
    B, F = 8, 32
    key = jax.random.PRNGKey(0)
    kx, kw, kb = jax.random.split(key, 3)

    x = jax.random.normal(kx, (B, F), dtype=jnp.float32)
    # nn.Linear(n_factor, 1, bias=True) parameters (synthetic, deterministic).
    w = jax.random.uniform(kw, (F, 1), dtype=jnp.float32, minval=-0.1, maxval=0.1)
    b = jax.random.uniform(kb, (1, 1), dtype=jnp.float32, minval=-0.1, maxval=0.1)

    out = logistic_regression(x, w, b)
    out = jax.block_until_ready(out)

    # Reference check in plain JAX (tolerance loosened for approx reciprocal).
    ref = jax.nn.sigmoid(x @ w + b)
    assert out.shape == (B, 1)
    assert jnp.allclose(out, ref, atol=5e-3), "mismatch vs reference"
    print("KERNEL_OK")
</pallas_src>

<mosaic_0001>
module attributes {stable_mosaic.version = 11 : i64} {
  func.func @logreg_kernel(%arg0: i32, %arg1: memref<32x128xf32, #tpu.memory_space<vmem>>, %arg2: memref<32x1xf32, #tpu.memory_space<vmem>>, %arg3: memref<1x1xf32, #tpu.memory_space<smem>>, %arg4: memref<1x128xf32, #tpu.memory_space<vmem>>) attributes {dimension_semantics = [#tpu.dimension_semantics<parallel>], iteration_bounds = array<i64: 1>, scalar_prefetch = 0 : i64, scratch_operands = 0 : i64, tpu.core_type = #tpu.core_type<tc>, window_params = [{transform_indices = @transform_0, window_bounds = array<i64: 32, 128>}, {pipeline_mode = #tpu.pipeline_mode<synchronous>, transform_indices = @transform_1, window_bounds = array<i64: 32, 1>}, {transform_indices = @transform_2, window_bounds = array<i64: 1, 1>}, {transform_indices = @transform_3, window_bounds = array<i64: 1, 128>}]} {
    %c0 = arith.constant 0 : index
    %c0_0 = arith.constant 0 : index
    %0 = vector.load %arg1[%c0, %c0_0] : memref<32x128xf32, #tpu.memory_space<vmem>>, vector<32x128xf32>
    %c0_1 = arith.constant 0 : index
    %c0_2 = arith.constant 0 : index
    %1 = vector.load %arg2[%c0_1, %c0_2] : memref<32x1xf32, #tpu.memory_space<vmem>>, vector<32x1xf32>
    %2 = vector.broadcast %1 : vector<32x1xf32> to vector<32x128xf32>
    %3 = arith.mulf %0, %2 : vector<32x128xf32>
    %cst = arith.constant dense<0.000000e+00> : vector<128xf32>
    %4 = vector.multi_reduction <add>, %3, %cst [0] : vector<32x128xf32> to vector<128xf32>
    %5 = vector.shape_cast %4 : vector<128xf32> to vector<1x128xf32>
    %c0_3 = arith.constant 0 : index
    %c0_4 = arith.constant 0 : index
    %6 = memref.load %arg3[%c0_3, %c0_4] : memref<1x1xf32, #tpu.memory_space<smem>>
    %7 = vector.broadcast %6 : f32 to vector<1x128xf32>
    %8 = arith.addf %5, %7 : vector<1x128xf32>
    %cst_5 = arith.constant 0.000000e+00 : f32
    %9 = vector.broadcast %cst_5 : f32 to vector<1x128xf32>
    %10 = arith.subf %9, %8 : vector<1x128xf32>
    %11 = math.exp %10 : vector<1x128xf32>
    %cst_6 = arith.constant 1.000000e+00 : f32
    %12 = vector.broadcast %cst_6 : f32 to vector<1x128xf32>
    %13 = arith.addf %12, %11 : vector<1x128xf32>
    %14 = tpu.reciprocal %13 {approx = true} : vector<1x128xf32> -> vector<1x128xf32>
    %c0_7 = arith.constant 0 : index
    %c0_8 = arith.constant 0 : index
    %15 = vector.load %arg4[%c0_7, %c0_8] : memref<1x128xf32, #tpu.memory_space<vmem>>, vector<1x128xf32>
    tpu.vector_store %arg4[%c0_7, %c0_8], %14 {strides = array<i32>} : memref<1x128xf32, #tpu.memory_space<vmem>>, vector<1x128xf32>,
    return
  }
  func.func @transform_0(%arg0: i32) -> (i32, i32) {
    %c0_i32 = arith.constant 0 : i32
    %c0_i32_0 = arith.constant 0 : i32
    return %c0_i32, %arg0 : i32, i32
  }
  func.func @transform_1(%arg0: i32) -> (i32, i32) {
    %c0_i32 = arith.constant 0 : i32
    %c0_i32_0 = arith.constant 0 : i32
    %c0_i32_1 = arith.constant 0 : i32
    return %c0_i32, %c0_i32_0 : i32, i32
  }
  func.func @transform_2(%arg0: i32) -> (i32, i32) {
    %c0_i32 = arith.constant 0 : i32
    %c0_i32_0 = arith.constant 0 : i32
    %c0_i32_1 = arith.constant 0 : i32
    return %c0_i32, %c0_i32_0 : i32, i32
  }
  func.func @transform_3(%arg0: i32) -> (i32, i32) {
    %c0_i32 = arith.constant 0 : i32
    %c0_i32_0 = arith.constant 0 : i32
    return %c0_i32, %arg0 : i32, i32
  }
}

</mosaic_0001>

<llo_original>
// kernel: tpu_custom_call.1
$region0: #{tpu_custom_call.1}
  #allocation0 [shape = 'u32[]', space=smem, size = 0x4, offset = 0x4, fixed_abs, tag = 'smem constant byte address 0x4 - core index']
  #allocation1 [shape = 'u32[144,128]{1,0:T(1,128)}', space=vmem, size = 0x12000, scoped, tag = 'internal scratch']
  #allocation2 [shape = 'f32[1,1]{1,0:T(1,128)S(6)}', space=smem, size = 0x200, scoped, tag = 'scoped memory for tpu_custom_call.1']
  %s0 = inlined_call_operand.vmem [shape: f32[32,128], index: 0, kind: input, shape index: {}]
  %s1 = inlined_call_operand.vmem [shape: f32[32,1], index: 1, kind: input, shape index: {}]
  %s2 = inlined_call_operand.<no memory space> [shape: f32[1,1], index: 2, kind: input, shape index: {}]
  %s3 = inlined_call_operand.hbm [shape: f32[1,128], index: 3, kind: output, shape index: {}]
  %s4 = sld [smem:[#allocation0]]
  $region22: #{tpu_custom_call.1} parent=0
    _
  %s6 = ssub.s32 1, %s4
  %s7 = scalar_select 0, %s6, %s4
  %8 = sst [smem:[#allocation2]] %s2
  $region1: #{tpu_custom_call.1} parent=0
    #allocation3 [shape = 'u8[512]{0}', space=vmem, size = 0x400, scoped, tag = 'output window, operand 0, single buffered']
    #allocation4 [shape = 's32[1]{0}', space=sflag, size = 0x4, scoped, tag = 'scoped memory for tpu_custom_call.1']
    %9 = vsyncpa [#allocation4], 0
    // Predicated region
    $region2: #{tpu_custom_call.1} parent=1 // pred_check
      _
    $region3: #{tpu_custom_call.1} parent=1 // pred_check_branch
      %11 = sbr.rel (0) target = $region5
    $region4: #{tpu_custom_call.1} parent=1 // pred_region
      _
    $region5: #{tpu_custom_call.1} parent=1 // pred_fallthru
      _
    // Predicated region
    $region6: #{tpu_custom_call.1} parent=1 // pred_check
      _
    $region7: #{tpu_custom_call.1} parent=1 // pred_check_branch
      %13 = sbr.rel (0) target = $region9
    $region8: #{tpu_custom_call.1} parent=1 // pred_region
      _
    $region9: #{tpu_custom_call.1} parent=1 // pred_fallthru
      _
    // Predicated region
    $region10: #{tpu_custom_call.1} parent=1 // pred_check
      _
    $region11: #{tpu_custom_call.1} parent=1 // pred_check_branch
      %15 = sbr.rel (0) target = $region13
    $region12: #{tpu_custom_call.1} parent=1 // pred_region
      _
    $region13: #{tpu_custom_call.1} parent=1 // pred_fallthru
      _
    %v16 = vld [vmem:[%s0] sm:$0xff]
    %v17 = vld [vmem:[%s0 + $0x8] sm:$0xff]
    %v18 = vld [vmem:[%s0 + $0x10] sm:$0xff]
    %v19 = vld [vmem:[%s0 + $0x18] sm:$0xff]
    %v20 = vld [vmem:[%s1] sm:$0xff]
    %v21 = vld [vmem:[%s1 + $0x8] sm:$0xff]
    %v22 = vld [vmem:[%s1 + $0x10] sm:$0xff]
    %v23 = vld [vmem:[%s1 + $0x18] sm:$0xff]
    %25 = vset.pattern.permute.xlu0 0
    %26 = vperm.xlu0 %25, %v20
    %v27 = vpop.permute.xlu0 %26
    %30 = vset.pattern.permute.xlu0 0
    %31 = vperm.xlu0 %30, %v21
    %v32 = vpop.permute.xlu0 %31
    %35 = vset.pattern.permute.xlu0 0
    %36 = vperm.xlu0 %35, %v22
    %v37 = vpop.permute.xlu0 %36
    %40 = vset.pattern.permute.xlu0 0
    %41 = vperm.xlu0 %40, %v23
    %v42 = vpop.permute.xlu0 %41
    %v44 = vmul.f32 %v16, %v27
    %v45 = vmul.f32 %v17, %v32
    %v46 = vmul.f32 %v18, %v37
    %v47 = vmul.f32 %v19, %v42
    %v48 = vadd.f32 %v44, %v45
    %v49 = vadd.f32 %v48, %v46
    %v50 = vadd.f32 %v49, %v47
    %v51 = vrot.slane %v50, 4
    %v52 = vadd.f32 %v50, %v51
    %v53 = vrot.slane %v52, 2
    %v54 = vadd.f32 %v52, %v53
    %v55 = vrot.slane %v54, 1
    %v56 = vadd.f32 %v54, %v55
    %s57 = sld [smem:[#allocation2]]
    %v58 = vstv %s57
    %v59 = vadd.f32 %v56, %v58
    %v60 = vsub.f32 0.0, %v59
    %v61 = vmul.f32 %v60, 1.442695
    %v62 = vpow.pop %v61
    %v63 = vadd.f32 %v62, 1.0
    %v64 = vrcp.pop %v63
    %65 = vst [vmem:[#allocation3] sm:$0x1] %v64
    // Predicated region
    $region14: #{tpu_custom_call.1} parent=1 // pred_check
      _
    $region15: #{tpu_custom_call.1} parent=1 // pred_check_branch
      %67 = sbr.rel (0) target = $region17
    $region16: #{tpu_custom_call.1} parent=1 // pred_region
      %s69 = ssub.s32 16, 16
      %70 = vsyncadd [#allocation4], %s69
      %s72 = sshll.u32 [#allocation3], 4
      %s73 = int_to_ptr.vmem [resolvable:$true] %s72
      %75 = dma.vmem_to_hbm [thread:$0]  %s73, 16, %s3, [#allocation4]
    $region17: #{tpu_custom_call.1} parent=1 // pred_fallthru
      _
    // Predicated region
    $region18: #{tpu_custom_call.1} parent=1 // pred_check
      _
    $region19: #{tpu_custom_call.1} parent=1 // pred_check_branch
      %77 = sbr.rel (0) target = $region21
    $region20: #{tpu_custom_call.1} parent=1 // pred_region
      %78 = dma.done [#allocation4], 16
    $region21: #{tpu_custom_call.1} parent=1 // pred_fallthru
      _
    %79 = vsyncpa [#allocation4], 1

</llo_original>
